<compile_context>
chip_gen: v5e
topology: v5e:2x2
jax: 0.10.0
libtpu: 0.0.40
codegen_flags: <defaults>
</compile_context>

<pallas_src>
import jax
import jax.numpy as jnp
from jax.experimental import pallas as pl
from jax.experimental.pallas import tpu as pltpu


def _round_up(v, m):
    return ((v + m - 1) // m) * m


def _ursonet_head_kernel(x_ref, w_ref, b_ref, out_ref):
    # x_ref: (TB, C, HW) in its native dtype; C on sublanes, HW on lanes.
    x = x_ref[...].astype(jnp.float32)
    inv_hw = jnp.float32(1.0 / x.shape[2])
    # Cross-lane reduce (XLU, far below the DMA roofline here); pooled (TB, C)
    # comes out lane-dense on C for the MXU contraction.
    pooled = jnp.sum(x, axis=2) * inv_hw

    # TODO(synk): nn.Dropout is identity in eval mode; training-mode stochastic
    # dropout on the orientation branch is omitted (would use pltpu.prng_seed /
    # pltpu.prng_random_bits on the pooled activations).

    # Fused orientation + position branches: one MXU matmul over concatenated,
    # lane-padded weights.
    out_ref[...] = (
        jnp.dot(pooled, w_ref[...], preferred_element_type=jnp.float32)
        + b_ref[...]
    )


def _vmem_capacity_bytes():
    """Physical VMEM of the current chip; conservative fallback if unqueryable."""
    try:
        return int(pltpu.get_tpu_info().vmem_capacity_bytes)
    except Exception:
        return 64 << 20  # v7x-sized conservative default


def _pick_batch_tile(B, C, HW, itemsize, target_bytes):
    """Batch tile so the VMEM-padded x block is ~<= target_bytes.

    tb is rounded UP to a multiple of 8 (output block sublane constraint) unless
    the whole batch fits in one block; for larger batches we force >= 2 grid
    steps so dual-TC chips (v7x) can split the work.
    """
    per_row = _round_up(C, 8) * _round_up(HW, 128) * itemsize
    if B < 16 and B * per_row <= target_bytes:
        return B                       # single block; block dims == array dims
    tb = max(1, target_bytes // per_row)
    if B >= 16:
        # Guarantee at least two grid steps (megacore sharding / DMA overlap).
        tb = min(tb, _round_up(pl.cdiv(B, 2), 8))
    if tb >= B:
        return B
    tb = max(8, _round_up(tb, 8))      # round UP, not down (review feedback)
    return min(tb, B)


def ursonet_head_forward(x_nchw, w_ori, b_ori, w_pos, b_pos):
    """x_nchw: (B, C, H, W).  w_*: (C, out) i.e. nn.Linear.weight transposed; b_*: (out,)."""
    B, C, H, W = x_nchw.shape
    HW = H * W
    n_ori = w_ori.shape[1]
    n_pos = w_pos.shape[1]
    n_tot = n_ori + n_pos
    n_pad = _round_up(n_tot, 128)      # lane-dense output slab (unmasked stores)

    # NCHW -> (B, C, HW): contiguous reshape, no HBM transpose, no dtype copy.
    x_flat = x_nchw.reshape(B, C, HW)
    itemsize = jnp.dtype(x_flat.dtype).itemsize

    # Fuse the two linear branches into one (C, n_pad) matmul; zero-pad columns.
    w_cat = jnp.zeros((C, n_pad), jnp.float32)
    w_cat = w_cat.at[:, :n_ori].set(w_ori.astype(jnp.float32))
    w_cat = w_cat.at[:, n_ori:n_tot].set(w_pos.astype(jnp.float32))
    b_cat = jnp.zeros((1, n_pad), jnp.float32)
    b_cat = b_cat.at[0, :n_ori].set(b_ori.astype(jnp.float32))
    b_cat = b_cat.at[0, n_ori:n_tot].set(b_pos.astype(jnp.float32))

    # Generation-aware tile / VMEM budgets.
    capacity = _vmem_capacity_bytes()
    usable = int(capacity * 0.75)              # leave headroom for Mosaic scratch
    if capacity >= (100 << 20):                # v5e / v6e (128 MiB physical)
        target_bytes = 16 << 20
    else:                                      # v7x (64 MiB physical) / unknown
        target_bytes = 12 << 20

    tb = _pick_batch_tile(B, C, HW, itemsize, target_bytes)
    grid = (pl.cdiv(B, tb),)

    # VMEM accounting: double-buffered x tile + resident weights/bias + output.
    x_tile_bytes = tb * _round_up(C, 8) * _round_up(HW, 128) * itemsize
    w_bytes = _round_up(C, 8) * n_pad * 4
    b_bytes = 8 * n_pad * 4
    out_tile_bytes = _round_up(tb, 8) * n_pad * 4
    vmem_limit = 2 * x_tile_bytes + 2 * (w_bytes + b_bytes) + 2 * out_tile_bytes + (2 << 20)
    vmem_limit = int(min(max(vmem_limit, 32 << 20), usable))

    cost = pl.CostEstimate(
        flops=2 * B * C * n_pad + B * C * HW,
        transcendentals=0,
        bytes_accessed=B * C * HW * itemsize + (C * n_pad + n_pad) * 4 + B * n_pad * 4,
    )

    def _build(pin_weights):
        # pipeline_mode=pl.Buffered(1): the weight/bias slabs have a constant
        # index_map, so skip double-buffering them (VMEM headroom on v7x).
        pin = {"pipeline_mode": pl.Buffered(1)} if pin_weights else {}
        return pl.pallas_call(
            _ursonet_head_kernel,
            out_shape=jax.ShapeDtypeStruct((B, n_pad), jnp.float32),
            grid_spec=pltpu.PrefetchScalarGridSpec(
                num_scalar_prefetch=0,
                grid=grid,
                in_specs=[
                    pl.BlockSpec((tb, C, HW), lambda i: (i, 0, 0)),       # streamed x
                    pl.BlockSpec((C, n_pad), lambda i: (0, 0), **pin),    # pinned W
                    pl.BlockSpec((1, n_pad), lambda i: (0, 0), **pin),    # pinned b
                ],
                out_specs=pl.BlockSpec((tb, n_pad), lambda i: (i, 0)),
            ),
            compiler_params=pltpu.CompilerParams(
                dimension_semantics=("parallel",),
                vmem_limit_bytes=vmem_limit,
            ),
            cost_estimate=cost,
        )

    try:
        out = _build(True)(x_flat, w_cat, b_cat)
    except Exception:
        # Buffered(1) is an optional VMEM-saving hint; fall back to the default
        # double-buffered pinned weights if this jax version rejects it.
        out = _build(False)(x_flat, w_cat, b_cat)

    ori = out[:, :n_ori]
    pos = out[:, n_ori:n_tot]
    return ori, pos


def _reference_forward(x_nchw, w_ori, b_ori, w_pos, b_pos):
    pooled = jnp.mean(x_nchw.astype(jnp.float32), axis=(2, 3))   # (B, C)
    ori = pooled @ w_ori + b_ori
    pos = pooled @ w_pos + b_pos
    return ori, pos


if __name__ == "__main__":
    # Small, module-consistent shapes: n_feature_maps=32, n_ori_outputs=16, n_pos_outputs=3
    B, C, H, W = 2, 32, 8, 8
    N_ORI, N_POS = 16, 3

    key = jax.random.PRNGKey(0)
    kx, kwo, kbo, kwp, kbp = jax.random.split(key, 5)

    x = jax.random.normal(kx, (B, C, H, W), dtype=jnp.float32)
    # Deterministic parameter init (roughly PyTorch Linear's uniform scale).
    # Weights are stored pre-transposed as (C, out) == nn.Linear.weight.T.
    bound = 1.0 / (C ** 0.5)
    w_ori = jax.random.uniform(kwo, (C, N_ORI), jnp.float32, -bound, bound)
    b_ori = jax.random.uniform(kbo, (N_ORI,), jnp.float32, -bound, bound)
    w_pos = jax.random.uniform(kwp, (C, N_POS), jnp.float32, -bound, bound)
    b_pos = jax.random.uniform(kbp, (N_POS,), jnp.float32, -bound, bound)

    ori, pos = ursonet_head_forward(x, w_ori, b_ori, w_pos, b_pos)
    jax.block_until_ready((ori, pos))

    ori_ref, pos_ref = _reference_forward(x, w_ori, b_ori, w_pos, b_pos)
    assert ori.shape == (B, N_ORI) and pos.shape == (B, N_POS)
    assert jnp.allclose(ori, ori_ref, atol=1e-5, rtol=1e-5)
    assert jnp.allclose(pos, pos_ref, atol=1e-5, rtol=1e-5)

    print("KERNEL_OK")
</pallas_src>

<mosaic_0001>
module attributes {stable_mosaic.version = 11 : i64} {
  func.func @_ursonet_head_kernel(%arg0: i32, %arg1: memref<2x32x64xf32, #tpu.memory_space<vmem>>, %arg2: memref<32x128xf32, #tpu.memory_space<vmem>>, %arg3: memref<1x128xf32, #tpu.memory_space<vmem>>, %arg4: memref<2x128xf32, #tpu.memory_space<vmem>>) attributes {dimension_semantics = [#tpu.dimension_semantics<parallel>], iteration_bounds = array<i64: 1>, scalar_prefetch = 0 : i64, scratch_operands = 0 : i64, tpu.core_type = #tpu.core_type<tc>, window_params = [{transform_indices = @transform_0, window_bounds = array<i64: 2, 32, 64>}, {pipeline_mode = #tpu.pipeline_mode<synchronous>, transform_indices = @transform_1, window_bounds = array<i64: 32, 128>}, {pipeline_mode = #tpu.pipeline_mode<synchronous>, transform_indices = @transform_2, window_bounds = array<i64: 1, 128>}, {transform_indices = @transform_3, window_bounds = array<i64: 2, 128>}]} {
    %c0 = arith.constant 0 : index
    %c0_0 = arith.constant 0 : index
    %c0_1 = arith.constant 0 : index
    %0 = vector.load %arg1[%c0, %c0_0, %c0_1] : memref<2x32x64xf32, #tpu.memory_space<vmem>>, vector<2x32x64xf32>
    %cst = arith.constant dense<0.000000e+00> : vector<2x32xf32>
    %1 = vector.multi_reduction <add>, %0, %cst [2] : vector<2x32x64xf32> to vector<2x32xf32>
    %cst_2 = arith.constant 1.562500e-02 : f32
    %2 = vector.broadcast %cst_2 : f32 to vector<2x32xf32>
    %3 = arith.mulf %1, %2 : vector<2x32xf32>
    %c0_3 = arith.constant 0 : index
    %c0_4 = arith.constant 0 : index
    %4 = vector.load %arg2[%c0_3, %c0_4] : memref<32x128xf32, #tpu.memory_space<vmem>>, vector<32x128xf32>
    %cst_5 = arith.constant dense<0.000000e+00> : vector<2x128xf32>
    %5 = tpu.matmul %3, %4, %cst_5 {dimension_numbers = #tpu.dot_dimension_numbers<[1], [0], [0], [1], [0, 0, 1, 1], [], []>} : vector<2x32xf32>, vector<32x128xf32>, vector<2x128xf32> -> vector<2x128xf32>
    %c0_6 = arith.constant 0 : index
    %c0_7 = arith.constant 0 : index
    %6 = vector.load %arg3[%c0_6, %c0_7] : memref<1x128xf32, #tpu.memory_space<vmem>>, vector<1x128xf32>
    %7 = vector.broadcast %6 : vector<1x128xf32> to vector<2x128xf32>
    %8 = arith.addf %5, %7 : vector<2x128xf32>
    %c0_8 = arith.constant 0 : index
    %c0_9 = arith.constant 0 : index
    %9 = vector.load %arg4[%c0_8, %c0_9] : memref<2x128xf32, #tpu.memory_space<vmem>>, vector<2x128xf32>
    tpu.vector_store %arg4[%c0_8, %c0_9], %8 {strides = array<i32>} : memref<2x128xf32, #tpu.memory_space<vmem>>, vector<2x128xf32>,
    return
  }
  func.func @transform_0(%arg0: i32) -> (i32, i32, i32) {
    %c0_i32 = arith.constant 0 : i32
    %c0_i32_0 = arith.constant 0 : i32
    %c0_i32_1 = arith.constant 0 : i32
    return %arg0, %c0_i32, %c0_i32_0 : i32, i32, i32
  }
  func.func @transform_1(%arg0: i32) -> (i32, i32) {
    %c0_i32 = arith.constant 0 : i32
    %c0_i32_0 = arith.constant 0 : i32
    %c0_i32_1 = arith.constant 0 : i32
    return %c0_i32, %c0_i32_0 : i32, i32
  }
  func.func @transform_2(%arg0: i32) -> (i32, i32) {
    %c0_i32 = arith.constant 0 : i32
    %c0_i32_0 = arith.constant 0 : i32
    %c0_i32_1 = arith.constant 0 : i32
    return %c0_i32, %c0_i32_0 : i32, i32
  }
  func.func @transform_3(%arg0: i32) -> (i32, i32) {
    %c0_i32 = arith.constant 0 : i32
    %c0_i32_0 = arith.constant 0 : i32
    return %arg0, %c0_i32 : i32, i32
  }
}

module attributes {stable_mosaic.version = 11 : i64} {
  func.func @_ursonet_head_kernel(%arg0: i32, %arg1: memref<2x32x64xf32, #tpu.memory_space<vmem>>, %arg2: memref<32x128xf32, #tpu.memory_space<vmem>>, %arg3: memref<1x128xf32, #tpu.memory_space<vmem>>, %arg4: memref<2x128xf32, #tpu.memory_space<vmem>>) attributes {dimension_semantics = [#tpu.dimension_semantics<parallel>], iteration_bounds = array<i64: 1>, scalar_prefetch = 0 : i64, scratch_operands = 0 : i64, tpu.core_type = #tpu.core_type<tc>, window_params = [{transform_indices = @transform_0, window_bounds = array<i64: 2, 32, 64>}, {pipeline_mode = #tpu.pipeline_mode<synchronous>, transform_indices = @transform_1, window_bounds = array<i64: 32, 128>}, {pipeline_mode = #tpu.pipeline_mode<synchronous>, transform_indices = @transform_2, window_bounds = array<i64: 1, 128>}, {transform_indices = @transform_3, window_bounds = array<i64: 2, 128>}]} {
    %c0 = arith.constant 0 : index
    %c0_0 = arith.constant 0 : index
    %c0_1 = arith.constant 0 : index
    %0 = vector.load %arg1[%c0, %c0_0, %c0_1] : memref<2x32x64xf32, #tpu.memory_space<vmem>>, vector<2x32x64xf32>
    %cst = arith.constant dense<0.000000e+00> : vector<2x32xf32>
    %1 = vector.multi_reduction <add>, %0, %cst [2] : vector<2x32x64xf32> to vector<2x32xf32>
    %cst_2 = arith.constant 1.562500e-02 : f32
    %2 = vector.broadcast %cst_2 : f32 to vector<2x32xf32>
    %3 = arith.mulf %1, %2 : vector<2x32xf32>
    %c0_3 = arith.constant 0 : index
    %c0_4 = arith.constant 0 : index
    %4 = vector.load %arg2[%c0_3, %c0_4] : memref<32x128xf32, #tpu.memory_space<vmem>>, vector<32x128xf32>
    %cst_5 = arith.constant dense<0.000000e+00> : vector<2x128xf32>
    %5 = tpu.matmul %3, %4, %cst_5 {dimension_numbers = #tpu.dot_dimension_numbers<[1], [0], [0], [1], [0, 0, 1, 1], [], []>} : vector<2x32xf32>, vector<32x128xf32>, vector<2x128xf32> -> vector<2x128xf32>
    %c0_6 = arith.constant 0 : index
    %c0_7 = arith.constant 0 : index
    %6 = vector.load %arg3[%c0_6, %c0_7] : memref<1x128xf32, #tpu.memory_space<vmem>>, vector<1x128xf32>
    %7 = vector.broadcast %6 : vector<1x128xf32> to vector<2x128xf32>
    %8 = arith.addf %5, %7 : vector<2x128xf32>
    %c0_8 = arith.constant 0 : index
    %c0_9 = arith.constant 0 : index
    %9 = vector.load %arg4[%c0_8, %c0_9] : memref<2x128xf32, #tpu.memory_space<vmem>>, vector<2x128xf32>
    tpu.vector_store %arg4[%c0_8, %c0_9], %8 {strides = array<i32>} : memref<2x128xf32, #tpu.memory_space<vmem>>, vector<2x128xf32>,
    return
  }
  func.func @transform_0(%arg0: i32) -> (i32, i32, i32) {
    %c0_i32 = arith.constant 0 : i32
    %c0_i32_0 = arith.constant 0 : i32
    %c0_i32_1 = arith.constant 0 : i32
    return %arg0, %c0_i32, %c0_i32_0 : i32, i32, i32
  }
  func.func @transform_1(%arg0: i32) -> (i32, i32) {
    %c0_i32 = arith.constant 0 : i32
    %c0_i32_0 = arith.constant 0 : i32
    %c0_i32_1 = arith.constant 0 : i32
    return %c0_i32, %c0_i32_0 : i32, i32
  }
  func.func @transform_2(%arg0: i32) -> (i32, i32) {
    %c0_i32 = arith.constant 0 : i32
    %c0_i32_0 = arith.constant 0 : i32
    %c0_i32_1 = arith.constant 0 : i32
    return %c0_i32, %c0_i32_0 : i32, i32
  }
  func.func @transform_3(%arg0: i32) -> (i32, i32) {
    %c0_i32 = arith.constant 0 : i32
    %c0_i32_0 = arith.constant 0 : i32
    return %arg0, %c0_i32 : i32, i32
  }
}

</mosaic_0001>

<llo_original>
// kernel: tpu_custom_call.1
$region0: #{tpu_custom_call.1}
  #allocation0 [shape = 'u32[]', space=smem, size = 0x4, offset = 0x4, fixed_abs, tag = 'smem constant byte address 0x4 - core index']
  #allocation1 [shape = 'u32[72,128]{1,0:T(1,128)}', space=vmem, size = 0x9000, scoped, tag = 'internal scratch']
  %s0 = inlined_call_operand.hbm [shape: f32[2,32,64], index: 0, kind: input, shape index: {}]
  %s1 = inlined_call_operand.hbm [shape: f32[32,128], index: 1, kind: input, shape index: {}]
  %s2 = inlined_call_operand.vmem [shape: f32[1,128], index: 2, kind: input, shape index: {}]
  %s3 = inlined_call_operand.hbm [shape: f32[2,128], index: 3, kind: output, shape index: {}]
  %s4 = sld [smem:[#allocation0]]
  $region30: #{tpu_custom_call.1} parent=0
    _
  %s6 = ssub.s32 1, %s4
  %s7 = scalar_select 0, %s6, %s4
  $region1: #{tpu_custom_call.1} parent=0
    #allocation2 [shape = 'u8[32768]{0}', space=vmem, size = 0x8000, scoped, tag = 'input window, operand 0, single buffered']
    #allocation3 [shape = 's32[1]{0}', space=sflag, size = 0x4, scoped, tag = 'scoped memory for tpu_custom_call.1']
    #allocation4 [shape = 's32[1]{0}', space=sflag, size = 0x4, scoped, tag = 'scoped memory for tpu_custom_call.1']
    #allocation5 [shape = 'u8[16384]{0}', space=vmem, size = 0x4000, scoped, tag = 'input window, operand 1, single buffered']
    #allocation6 [shape = 's32[1]{0}', space=sflag, size = 0x4, scoped, tag = 'scoped memory for tpu_custom_call.1']
    #allocation7 [shape = 'u8[1024]{0}', space=vmem, size = 0x400, scoped, tag = 'output window, operand 0, single buffered']
    %8 = vsyncpa [#allocation3], 0
    %9 = vsyncpa [#allocation6], 0
    %10 = vsyncpa [#allocation4], 0
    // Predicated region
    $region2: #{tpu_custom_call.1} parent=1 // pred_check
      _
    $region3: #{tpu_custom_call.1} parent=1 // pred_check_branch
      %12 = sbr.rel (0) target = $region5
    $region4: #{tpu_custom_call.1} parent=1 // pred_region
      %14 = vsyncadd [#allocation3], 0
      %s15 = sshll.u32 %s0, 4
      %s16 = int_to_ptr.hbm [resolvable:$true] %s15
      %s17 = sshll.u32 [#allocation2], 4
      %s18 = int_to_ptr.vmem [resolvable:$true] %s17
      %23 = dma.hbm_to_vmem [thread:$0]  %s16, 1024, %s18, [#allocation3], 128, 128, 8
    $region5: #{tpu_custom_call.1} parent=1 // pred_fallthru
      _
    // Predicated region
    $region6: #{tpu_custom_call.1} parent=1 // pred_check
      _
    $region7: #{tpu_custom_call.1} parent=1 // pred_check_branch
      %25 = sbr.rel (0) target = $region9
    $region8: #{tpu_custom_call.1} parent=1 // pred_region
      %27 = vsyncadd [#allocation6], 0
      %s28 = sshll.u32 %s1, 4
      %s29 = int_to_ptr.hbm [resolvable:$true] %s28
      %s30 = sshll.u32 [#allocation5], 4
      %s31 = int_to_ptr.vmem [resolvable:$true] %s30
      %36 = dma.hbm_to_vmem [thread:$0]  %s29, 512, %s31, [#allocation6], 128, 128, 8
    $region9: #{tpu_custom_call.1} parent=1 // pred_fallthru
      _
    // Predicated region
    $region10: #{tpu_custom_call.1} parent=1 // pred_check
      _
    $region11: #{tpu_custom_call.1} parent=1 // pred_check_branch
      %38 = sbr.rel (0) target = $region13
    $region12: #{tpu_custom_call.1} parent=1 // pred_region
      _
    $region13: #{tpu_custom_call.1} parent=1 // pred_fallthru
      _
    // Predicated region
    $region14: #{tpu_custom_call.1} parent=1 // pred_check
      _
    $region15: #{tpu_custom_call.1} parent=1 // pred_check_branch
      %40 = sbr.rel (0) target = $region17
    $region16: #{tpu_custom_call.1} parent=1 // pred_region
      %42 = dma.done [#allocation3], 1024
    $region17: #{tpu_custom_call.1} parent=1 // pred_fallthru
      _
    // Predicated region
    $region18: #{tpu_custom_call.1} parent=1 // pred_check
      _
    $region19: #{tpu_custom_call.1} parent=1 // pred_check_branch
      %44 = sbr.rel (0) target = $region21
    $region20: #{tpu_custom_call.1} parent=1 // pred_region
      %46 = dma.done [#allocation6], 512
    $region21: #{tpu_custom_call.1} parent=1 // pred_fallthru
      _
    %v47 = vld [vmem:[#allocation2] sm:$0xff]
    %v48 = vld [vmem:[#allocation2 + $0x8] sm:$0xff]
    %v49 = vld [vmem:[#allocation2 + $0x10] sm:$0xff]
    %v50 = vld [vmem:[#allocation2 + $0x18] sm:$0xff]
    %v51 = vld [vmem:[#allocation2 + $0x20] sm:$0xff]
    %v52 = vld [vmem:[#allocation2 + $0x28] sm:$0xff]
    %v53 = vld [vmem:[#allocation2 + $0x30] sm:$0xff]
    %v54 = vld [vmem:[#allocation2 + $0x38] sm:$0xff]
    %vm55 = vcmask 523264
    %v56 = vsel %vm55, %v47, 0.0
    %57 = vadd.xlane.f32.xlu0 %v56
    %v58 = vpop.xlane.xlu0 %57
    %v59 = vsel %vm55, %v48, 0.0
    %60 = vadd.xlane.f32.xlu0 %v59
    %v61 = vpop.xlane.xlu0 %60
    %v62 = vsel %vm55, %v49, 0.0
    %63 = vadd.xlane.f32.xlu0 %v62
    %v64 = vpop.xlane.xlu0 %63
    %v65 = vsel %vm55, %v50, 0.0
    %66 = vadd.xlane.f32.xlu0 %v65
    %v67 = vpop.xlane.xlu0 %66
    %v68 = vsel %vm55, %v51, 0.0
    %69 = vadd.xlane.f32.xlu0 %v68
    %v70 = vpop.xlane.xlu0 %69
    %v71 = vsel %vm55, %v52, 0.0
    %72 = vadd.xlane.f32.xlu0 %v71
    %v73 = vpop.xlane.xlu0 %72
    %v74 = vsel %vm55, %v53, 0.0
    %75 = vadd.xlane.f32.xlu0 %v74
    %v76 = vpop.xlane.xlu0 %75
    %v77 = vsel %vm55, %v54, 0.0
    %78 = vadd.xlane.f32.xlu0 %v77
    %v79 = vpop.xlane.xlu0 %78
    %v80 = vmul.f32 %v58, 0.015625
    %v81 = vmul.f32 %v61, 0.015625
    %v82 = vmul.f32 %v64, 0.015625
    %v83 = vmul.f32 %v67, 0.015625
    %v84 = vmul.f32 %v70, 0.015625
    %v85 = vmul.f32 %v73, 0.015625
    %v86 = vmul.f32 %v76, 0.015625
    %v87 = vmul.f32 %v79, 0.015625
    %v88 = vld [vmem:[#allocation5] sm:$0xff]
    %v89 = vld [vmem:[#allocation5 + $0x8] sm:$0xff]
    %v90 = vld [vmem:[#allocation5 + $0x10] sm:$0xff]
    %v91 = vld [vmem:[#allocation5 + $0x18] sm:$0xff]
    %v92 = vld [vmem:[%s2] sm:$0x1]
    %v94 = vperm.slane %v92, 0
    %v104 = vlaneseq
    %v105 = vand.u32 %v104, 127
    %v106 = vperm.slane %v80, %v105
    %v107 = vadd.s32 %v105, 4294967288
    %v108 = vperm.slane %v81, %v107
    %vm109 = vcmask 130112
    %v110 = vsel %vm109, %v108, %v106
    %v111 = vadd.s32 %v105, 4294967280
    %v112 = vperm.slane %v82, %v111
    %vm113 = vcmask 195712
    %v114 = vsel %vm113, %v112, %v110
    %v115 = vadd.s32 %v105, 4294967272
    %v116 = vperm.slane %v83, %v115
    %vm117 = vcmask 261312
    %v118 = vsel %vm117, %v116, %v114
    %v119 = vperm.slane %v84, %v105
    %v120 = vperm.slane %v85, %v107
    %v121 = vsel %vm109, %v120, %v119
    %v122 = vperm.slane %v86, %v111
    %v123 = vsel %vm113, %v122, %v121
    %v124 = vperm.slane %v87, %v115
    %v125 = vsel %vm117, %v124, %v123
    %vm126 = vcmask 1041409
    %v127 = vsel %vm126, %v125, %v118
    %vm128 = vcmask 261120
    %v129 = vsel %vm128, %v127, 0
    %131 = vmatpush.msra.mxu0 0.0
    %132 = vmatpush.msra.mxu0 0.0
    %133 = vmatpush.msra.mxu0 0.0
    %134 = vmatpush.msra.mxu0 0.0
    %135 = vmatpush.msra.mxu0 0.0
    %136 = vmatpush.msra.mxu0 0.0
    %137 = vmatpush.msra.mxu0 0.0
    %138 = vmatpush.msra.mxu0 0.0
    %139 = vmatpush.msra.mxu0 0.0
    %140 = vmatpush.msra.mxu0 0.0
    %141 = vmatpush.msra.mxu0 0.0
    %142 = vmatpush.msra.mxu0 0.0
    %143 = vmatpush.msra.mxu0 %v91
    %144 = vmatpush.msra.mxu0 %v90
    %145 = vmatpush.msra.mxu0 %v89
    %146 = vmatpush.msra.mxu0 %v88
    %147 = vmatmul.f32.gmra.mxu0 %v129
    %v148 = vpop.f32.mrf.mxu0
    %v149 = vadd.f32 %v94, %v148
    %150 = vdwg.mxu0
    %151 = vst [vmem:[#allocation7] sm:$0x3] %v149
    // Predicated region
    $region22: #{tpu_custom_call.1} parent=1 // pred_check
      _
    $region23: #{tpu_custom_call.1} parent=1 // pred_check_branch
      %153 = sbr.rel (0) target = $region25
    $region24: #{tpu_custom_call.1} parent=1 // pred_region
      %155 = vsyncadd [#allocation4], 0
      %s157 = sshll.u32 [#allocation7], 4
      %s158 = int_to_ptr.vmem [resolvable:$true] %s157
      %s159 = sshll.u32 %s3, 4
      %s160 = int_to_ptr.hbm [resolvable:$true] %s159
      %162 = dma.vmem_to_hbm [thread:$0]  %s158, 32, %s160, [#allocation4]
    $region25: #{tpu_custom_call.1} parent=1 // pred_fallthru
      _
    // Predicated region
    $region26: #{tpu_custom_call.1} parent=1 // pred_check
      _
    $region27: #{tpu_custom_call.1} parent=1 // pred_check_branch
      %164 = sbr.rel (0) target = $region29
    $region28: #{tpu_custom_call.1} parent=1 // pred_region
      %166 = dma.done [#allocation4], 32
    $region29: #{tpu_custom_call.1} parent=1 // pred_fallthru
      _
    %167 = vsyncpa [#allocation3], 1
    %168 = vsyncpa [#allocation6], 1
    %169 = vsyncpa [#allocation4], 1

// kernel: tpu_custom_call.1
$region0: #{tpu_custom_call.1}
  #allocation0 [shape = 'u32[]', space=smem, size = 0x4, offset = 0x4, fixed_abs, tag = 'smem constant byte address 0x4 - core index']
  #allocation1 [shape = 'u32[72,128]{1,0:T(1,128)}', space=vmem, size = 0x9000, scoped, tag = 'internal scratch']
  %s0 = inlined_call_operand.hbm [shape: f32[2,32,64], index: 0, kind: input, shape index: {}]
  %s1 = inlined_call_operand.hbm [shape: f32[32,128], index: 1, kind: input, shape index: {}]
  %s2 = inlined_call_operand.vmem [shape: f32[1,128], index: 2, kind: input, shape index: {}]
  %s3 = inlined_call_operand.hbm [shape: f32[2,128], index: 3, kind: output, shape index: {}]
  %s4 = sld [smem:[#allocation0]]
  $region30: #{tpu_custom_call.1} parent=0
    _
  %s6 = ssub.s32 1, %s4
  %s7 = scalar_select 0, %s6, %s4
  $region1: #{tpu_custom_call.1} parent=0
    #allocation2 [shape = 'u8[32768]{0}', space=vmem, size = 0x8000, scoped, tag = 'input window, operand 0, single buffered']
    #allocation3 [shape = 's32[1]{0}', space=sflag, size = 0x4, scoped, tag = 'scoped memory for tpu_custom_call.1']
    #allocation4 [shape = 's32[1]{0}', space=sflag, size = 0x4, scoped, tag = 'scoped memory for tpu_custom_call.1']
    #allocation5 [shape = 'u8[16384]{0}', space=vmem, size = 0x4000, scoped, tag = 'input window, operand 1, single buffered']
    #allocation6 [shape = 's32[1]{0}', space=sflag, size = 0x4, scoped, tag = 'scoped memory for tpu_custom_call.1']
    #allocation7 [shape = 'u8[1024]{0}', space=vmem, size = 0x400, scoped, tag = 'output window, operand 0, single buffered']
    %8 = vsyncpa [#allocation3], 0
    %9 = vsyncpa [#allocation6], 0
    %10 = vsyncpa [#allocation4], 0
    // Predicated region
    $region2: #{tpu_custom_call.1} parent=1 // pred_check
      _
    $region3: #{tpu_custom_call.1} parent=1 // pred_check_branch
      %12 = sbr.rel (0) target = $region5
    $region4: #{tpu_custom_call.1} parent=1 // pred_region
      %14 = vsyncadd [#allocation3], 0
      %s15 = sshll.u32 %s0, 4
      %s16 = int_to_ptr.hbm [resolvable:$true] %s15
      %s17 = sshll.u32 [#allocation2], 4
      %s18 = int_to_ptr.vmem [resolvable:$true] %s17
      %23 = dma.hbm_to_vmem [thread:$0]  %s16, 1024, %s18, [#allocation3], 128, 128, 8
    $region5: #{tpu_custom_call.1} parent=1 // pred_fallthru
      _
    // Predicated region
    $region6: #{tpu_custom_call.1} parent=1 // pred_check
      _
    $region7: #{tpu_custom_call.1} parent=1 // pred_check_branch
      %25 = sbr.rel (0) target = $region9
    $region8: #{tpu_custom_call.1} parent=1 // pred_region
      %27 = vsyncadd [#allocation6], 0
      %s28 = sshll.u32 %s1, 4
      %s29 = int_to_ptr.hbm [resolvable:$true] %s28
      %s30 = sshll.u32 [#allocation5], 4
      %s31 = int_to_ptr.vmem [resolvable:$true] %s30
      %36 = dma.hbm_to_vmem [thread:$0]  %s29, 512, %s31, [#allocation6], 128, 128, 8
    $region9: #{tpu_custom_call.1} parent=1 // pred_fallthru
      _
    // Predicated region
    $region10: #{tpu_custom_call.1} parent=1 // pred_check
      _
    $region11: #{tpu_custom_call.1} parent=1 // pred_check_branch
      %38 = sbr.rel (0) target = $region13
    $region12: #{tpu_custom_call.1} parent=1 // pred_region
      _
    $region13: #{tpu_custom_call.1} parent=1 // pred_fallthru
      _
    // Predicated region
    $region14: #{tpu_custom_call.1} parent=1 // pred_check
      _
    $region15: #{tpu_custom_call.1} parent=1 // pred_check_branch
      %40 = sbr.rel (0) target = $region17
    $region16: #{tpu_custom_call.1} parent=1 // pred_region
      %42 = dma.done [#allocation3], 1024
    $region17: #{tpu_custom_call.1} parent=1 // pred_fallthru
      _
    // Predicated region
    $region18: #{tpu_custom_call.1} parent=1 // pred_check
      _
    $region19: #{tpu_custom_call.1} parent=1 // pred_check_branch
      %44 = sbr.rel (0) target = $region21
    $region20: #{tpu_custom_call.1} parent=1 // pred_region
      %46 = dma.done [#allocation6], 512
    $region21: #{tpu_custom_call.1} parent=1 // pred_fallthru
      _
    %v47 = vld [vmem:[#allocation2] sm:$0xff]
    %v48 = vld [vmem:[#allocation2 + $0x8] sm:$0xff]
    %v49 = vld [vmem:[#allocation2 + $0x10] sm:$0xff]
    %v50 = vld [vmem:[#allocation2 + $0x18] sm:$0xff]
    %v51 = vld [vmem:[#allocation2 + $0x20] sm:$0xff]
    %v52 = vld [vmem:[#allocation2 + $0x28] sm:$0xff]
    %v53 = vld [vmem:[#allocation2 + $0x30] sm:$0xff]
    %v54 = vld [vmem:[#allocation2 + $0x38] sm:$0xff]
    %vm55 = vcmask 523264
    %v56 = vsel %vm55, %v47, 0.0
    %57 = vadd.xlane.f32.xlu0 %v56
    %v58 = vpop.xlane.xlu0 %57
    %v59 = vsel %vm55, %v48, 0.0
    %60 = vadd.xlane.f32.xlu0 %v59
    %v61 = vpop.xlane.xlu0 %60
    %v62 = vsel %vm55, %v49, 0.0
    %63 = vadd.xlane.f32.xlu0 %v62
    %v64 = vpop.xlane.xlu0 %63
    %v65 = vsel %vm55, %v50, 0.0
    %66 = vadd.xlane.f32.xlu0 %v65
    %v67 = vpop.xlane.xlu0 %66
    %v68 = vsel %vm55, %v51, 0.0
    %69 = vadd.xlane.f32.xlu0 %v68
    %v70 = vpop.xlane.xlu0 %69
    %v71 = vsel %vm55, %v52, 0.0
    %72 = vadd.xlane.f32.xlu0 %v71
    %v73 = vpop.xlane.xlu0 %72
    %v74 = vsel %vm55, %v53, 0.0
    %75 = vadd.xlane.f32.xlu0 %v74
    %v76 = vpop.xlane.xlu0 %75
    %v77 = vsel %vm55, %v54, 0.0
    %78 = vadd.xlane.f32.xlu0 %v77
    %v79 = vpop.xlane.xlu0 %78
    %v80 = vmul.f32 %v58, 0.015625
    %v81 = vmul.f32 %v61, 0.015625
    %v82 = vmul.f32 %v64, 0.015625
    %v83 = vmul.f32 %v67, 0.015625
    %v84 = vmul.f32 %v70, 0.015625
    %v85 = vmul.f32 %v73, 0.015625
    %v86 = vmul.f32 %v76, 0.015625
    %v87 = vmul.f32 %v79, 0.015625
    %v88 = vld [vmem:[#allocation5] sm:$0xff]
    %v89 = vld [vmem:[#allocation5 + $0x8] sm:$0xff]
    %v90 = vld [vmem:[#allocation5 + $0x10] sm:$0xff]
    %v91 = vld [vmem:[#allocation5 + $0x18] sm:$0xff]
    %v92 = vld [vmem:[%s2] sm:$0x1]
    %v94 = vperm.slane %v92, 0
    %v104 = vlaneseq
    %v105 = vand.u32 %v104, 127
    %v106 = vperm.slane %v80, %v105
    %v107 = vadd.s32 %v105, 4294967288
    %v108 = vperm.slane %v81, %v107
    %vm109 = vcmask 130112
    %v110 = vsel %vm109, %v108, %v106
    %v111 = vadd.s32 %v105, 4294967280
    %v112 = vperm.slane %v82, %v111
    %vm113 = vcmask 195712
    %v114 = vsel %vm113, %v112, %v110
    %v115 = vadd.s32 %v105, 4294967272
    %v116 = vperm.slane %v83, %v115
    %vm117 = vcmask 261312
    %v118 = vsel %vm117, %v116, %v114
    %v119 = vperm.slane %v84, %v105
    %v120 = vperm.slane %v85, %v107
    %v121 = vsel %vm109, %v120, %v119
    %v122 = vperm.slane %v86, %v111
    %v123 = vsel %vm113, %v122, %v121
    %v124 = vperm.slane %v87, %v115
    %v125 = vsel %vm117, %v124, %v123
    %vm126 = vcmask 1041409
    %v127 = vsel %vm126, %v125, %v118
    %vm128 = vcmask 261120
    %v129 = vsel %vm128, %v127, 0
    %131 = vmatpush.msra.mxu0 0.0
    %132 = vmatpush.msra.mxu0 0.0
    %133 = vmatpush.msra.mxu0 0.0
    %134 = vmatpush.msra.mxu0 0.0
    %135 = vmatpush.msra.mxu0 0.0
    %136 = vmatpush.msra.mxu0 0.0
    %137 = vmatpush.msra.mxu0 0.0
    %138 = vmatpush.msra.mxu0 0.0
    %139 = vmatpush.msra.mxu0 0.0
    %140 = vmatpush.msra.mxu0 0.0
    %141 = vmatpush.msra.mxu0 0.0
    %142 = vmatpush.msra.mxu0 0.0
    %143 = vmatpush.msra.mxu0 %v91
    %144 = vmatpush.msra.mxu0 %v90
    %145 = vmatpush.msra.mxu0 %v89
    %146 = vmatpush.msra.mxu0 %v88
    %147 = vmatmul.f32.gmra.mxu0 %v129
    %v148 = vpop.f32.mrf.mxu0
    %v149 = vadd.f32 %v94, %v148
    %150 = vdwg.mxu0
    %151 = vst [vmem:[#allocation7] sm:$0x3] %v149
    // Predicated region
    $region22: #{tpu_custom_call.1} parent=1 // pred_check
      _
    $region23: #{tpu_custom_call.1} parent=1 // pred_check_branch
      %153 = sbr.rel (0) target = $region25
    $region24: #{tpu_custom_call.1} parent=1 // pred_region
      %155 = vsyncadd [#allocation4], 0
      %s157 = sshll.u32 [#allocation7], 4
      %s158 = int_to_ptr.vmem [resolvable:$true] %s157
      %s159 = sshll.u32 %s3, 4
      %s160 = int_to_ptr.hbm [resolvable:$true] %s159
      %162 = dma.vmem_to_hbm [thread:$0]  %s158, 32, %s160, [#allocation4]
    $region25: #{tpu_custom_call.1} parent=1 // pred_fallthru
      _
    // Predicated region
    $region26: #{tpu_custom_call.1} parent=1 // pred_check
      _
    $region27: #{tpu_custom_call.1} parent=1 // pred_check_branch
      %164 = sbr.rel (0) target = $region29
    $region28: #{tpu_custom_call.1} parent=1 // pred_region
      %166 = dma.done [#allocation4], 32
    $region29: #{tpu_custom_call.1} parent=1 // pred_fallthru
      _
    %167 = vsyncpa [#allocation3], 1
    %168 = vsyncpa [#allocation6], 1
    %169 = vsyncpa [#allocation4], 1

</llo_original>
